<compile_context>
chip_gen: v7x
topology: tpu7x:2x2x1
jax: 0.10.0
libtpu: 0.0.40
codegen_flags: <defaults>
</compile_context>

<pallas_src>
import numpy as np
import jax
import jax.numpy as jnp
from jax import lax
from jax.experimental import pallas as pl
from jax.experimental.pallas import tpu as pltpu

LANES = 128
MAX_BLOCK_ROWS = 2048  # 2048 x 128 f32 = 1 MiB per input buffer per grid step


def _pow(x, p):
    """Power with integer exponents pinned to lax.integer_pow (VPU, no EUP)."""
    p = float(p)
    if p == 1.0:
        return x
    if p.is_integer():
        return lax.integer_pow(x, int(p))
    return x ** p  # TODO(synk): non-integer exponents fall back to lax.pow (EUP).


def _make_focal_kernel(alpha, beta, pos_weight, neg_weight, eps, scale,
                       block_rows, tiles_per_split, total_elems, needs_mask):
    """Builds the per-block kernel with all hyperparameters baked in."""

    def kernel(yp_ref, yt_ref, out_ref, acc_ref):
        k = pl.program_id(1)

        @pl.when(k == 0)
        def _():
            acc_ref[...] = jnp.zeros_like(acc_ref)

        yp = yp_ref[...].astype(jnp.float32)   # (block_rows, 128)
        yt = yt_ref[...].astype(jnp.float32)   # (block_rows, 128)

        pos = yt == 1.0
        pos_ind = pos.astype(jnp.float32)
        neg_ind = 1.0 - pos_ind                       # (ytrue != 1)
        w = jnp.where(yt != 0.0, pos_weight, neg_weight)

        # One log per element: pos lanes need log(yp+eps), others log(1-yp+eps).
        lg = jnp.log(jnp.where(pos, yp, 1.0 - yp) + eps)

        loss1 = pos_ind * _pow(1.0 - yp, alpha) * lg
        loss2 = neg_ind * _pow(1.0 - yt, beta) * _pow(yp, alpha) * lg
        contrib = w * (loss1 + loss2)

        if needs_mask:
            # Mask elements past the true element count (tail / clamped blocks).
            blk = pl.program_id(0) * tiles_per_split + k
            sub = lax.broadcasted_iota(jnp.int32, (block_rows, LANES), 0)
            lane = lax.broadcasted_iota(jnp.int32, (block_rows, LANES), 1)
            elem = (blk * block_rows + sub) * LANES + lane
            contrib = jnp.where(elem < total_elems, contrib, 0.0)

        # Pure-VPU reduction over 8-row groups into the small resident acc:
        # (block_rows, 128) -> (G, 8, 128) is the native vreg layout (no copy).
        acc_ref[...] += contrib.reshape(block_rows // 8, 8, LANES).sum(axis=0)

        @pl.when(k == pl.num_programs(1) - 1)
        def _():
            total = jnp.sum(acc_ref[...])             # single cross-lane reduce
            out_ref[...] = (total * scale).reshape(1, 1)

    return kernel


def custom_focal_loss(ypred, ytrue, alpha=2, beta=4, pos_weight=0.4, eps=1e-5,
                      max_block_rows=MAX_BLOCK_ROWS):
    """Pallas implementation of CustomFocalLoss.forward.

    ypred: (n, 1, H, W) probabilities; ytrue: (n, H, W) targets in [0, 1].
    bf16 inputs are accepted directly (cast to f32 inside the kernel).
    """
    n = ypred.shape[0]
    H = ypred.shape[-2]
    W = ypred.shape[-1]
    scale = -1.0 / float(n * H * W)
    pos_weight = float(pos_weight)
    neg_weight = 1.0 - pos_weight

    yp = ypred.reshape(-1)   # squeeze(dim=1) does not change element order
    yt = ytrue.reshape(-1)
    T = int(yp.shape[0])

    # Lane-dense (rows, 128) layout. Only pad to a multiple of 128 lanes if
    # required for the reshape (never happens for the canonical n x 128 x 128
    # heatmaps); the padded tail is excluded by the in-kernel mask.
    rem = T % LANES
    if rem:
        pad = LANES - rem
        yp = jnp.pad(yp, (0, pad))
        yt = jnp.pad(yt, (0, pad))
    rows = int(yp.shape[0]) // LANES
    yp2 = yp.reshape(rows, LANES)
    yt2 = yt.reshape(rows, LANES)

    # Big, sublane-aligned blocks; grid covers cdiv(rows, block_rows) blocks,
    # partial tail handled by the in-kernel mask (no block-multiple padding).
    block_rows = min(int(max_block_rows), ((rows + 7) // 8) * 8)
    n_tiles = pl.cdiv(rows, block_rows)

    # Split the row range 2 ways so both v7x TensorCores get work (harmless on
    # single-TC v5e/v6e).
    num_splits = 2 if n_tiles >= 2 else 1
    tiles_per_split = pl.cdiv(n_tiles, num_splits)

    covered_elems = num_splits * tiles_per_split * block_rows * LANES
    needs_mask = covered_elems != T
    need_clamp = num_splits * tiles_per_split > n_tiles

    if need_clamp:
        def idx_map(p, k):
            return (jnp.minimum(p * tiles_per_split + k, n_tiles - 1), 0)
    else:
        def idx_map(p, k):
            return (p * tiles_per_split + k, 0)

    kernel = _make_focal_kernel(alpha, beta, pos_weight, neg_weight, float(eps),
                                scale, block_rows, tiles_per_split, T,
                                needs_mask)

    partial = pl.pallas_call(
        kernel,
        out_shape=jax.ShapeDtypeStruct((num_splits, 1), jnp.float32),
        grid_spec=pltpu.PrefetchScalarGridSpec(
            num_scalar_prefetch=0,
            grid=(num_splits, tiles_per_split),
            in_specs=[
                pl.BlockSpec((block_rows, LANES), idx_map),
                pl.BlockSpec((block_rows, LANES), idx_map),
            ],
            out_specs=pl.BlockSpec((1, 1), lambda p, k: (p, 0)),
            scratch_shapes=[pltpu.VMEM((8, LANES), jnp.float32)],
        ),
        compiler_params=pltpu.CompilerParams(
            dimension_semantics=("parallel", "arbitrary")),
    )(yp2, yt2)
    return jnp.sum(partial)


# ----------------------------- pure-numpy reference -----------------------------
def reference_loss(ypred, ytrue, alpha=2, beta=4, pos_weight=0.4, eps=1e-5):
    yp = np.asarray(ypred, np.float64).reshape(ypred.shape[0],
                                               ypred.shape[-2], ypred.shape[-1])
    yt = np.asarray(ytrue, np.float64)
    w = np.where(yt != 0, pos_weight, 1.0 - pos_weight)
    loss1 = (yt == 1).astype(np.float64) * (1.0 - yp) ** alpha * np.log(yp + eps)
    loss2 = ((yt != 1).astype(np.float64) * (1.0 - yt) ** beta
             * yp ** alpha * np.log(1.0 - yp + eps))
    loss = w * (loss1 + loss2)
    return -1.0 / yp.shape[0] / yp.shape[1] / yp.shape[2] * loss.sum()


def _make_inputs(key, n, H, W):
    k1, k2 = jax.random.split(key, 2)
    ypred = jax.random.uniform(k1, (n, 1, H, W), jnp.float32,
                               minval=0.01, maxval=0.99)
    ytrue = jax.random.uniform(k2, (n, H, W), jnp.float32)
    ytrue = jnp.where(ytrue < 0.7, 0.0, ytrue)          # mostly exact zeros
    ytrue = ytrue.at[:, 3, 5].set(1.0)                   # a few exact ones
    ytrue = ytrue.at[0, H - 2, 2].set(1.0)
    return ypred, ytrue


if __name__ == "__main__":
    key = jax.random.PRNGKey(0)

    # (n, H, W, max_block_rows): the small overrides exercise the multi-tile,
    # parallel-split, index-clamp and tail-mask paths that large heatmaps hit.
    configs = [
        (2, 16, 16, MAX_BLOCK_ROWS),  # single partial block, masked tail
        (3, 32, 32, 8),               # multi-tile + 2-way split + clamp + mask
        (2, 15, 15, 8),               # T not a multiple of 128 (lane pad path)
    ]

    for idx, (n, H, W, mbr) in enumerate(configs):
        key, sub = jax.random.split(key)
        ypred, ytrue = _make_inputs(sub, n, H, W)
        loss = custom_focal_loss(ypred, ytrue, max_block_rows=mbr)
        loss = jax.block_until_ready(loss)
        ref = reference_loss(ypred, ytrue)
        assert abs(float(loss) - float(ref)) < 1e-4 * max(1.0, abs(float(ref))), (
            idx, float(loss), float(ref))

    print("KERNEL_OK")
</pallas_src>

<mosaic_0001>
module attributes {stable_mosaic.version = 11 : i64} {
  func.func @kernel(%arg0: i32, %arg1: i32, %arg2: memref<8x128xf32, #tpu.memory_space<vmem>>, %arg3: memref<8x128xf32, #tpu.memory_space<vmem>>, %arg4: memref<1x1xf32, #tpu.memory_space<vmem>>, %arg5: memref<8x128xf32, #tpu.memory_space<vmem>>) attributes {dimension_semantics = [#tpu.dimension_semantics<parallel>, #tpu.dimension_semantics<arbitrary>], iteration_bounds = array<i64: 1, 1>, scalar_prefetch = 0 : i64, scratch_operands = 1 : i64, tpu.core_type = #tpu.core_type<tc>, window_params = [{transform_indices = @transform_0, window_bounds = array<i64: 8, 128>}, {transform_indices = @transform_1, window_bounds = array<i64: 8, 128>}, {transform_indices = @transform_2, window_bounds = array<i64: 1, 1>}]} {
    %c0_i32 = arith.constant 0 : i32
    %0 = arith.cmpi eq, %arg1, %c0_i32 : i32
    %1 = arith.extui %0 : i1 to i32
    %c0_i32_0 = arith.constant 0 : i32
    %2 = arith.cmpi ne, %1, %c0_i32_0 : i32
    scf.if %2 {
      %cst_20 = arith.constant 0.000000e+00 : f32
      %59 = vector.broadcast %cst_20 : f32 to vector<8x128xf32>
      %c0_21 = arith.constant 0 : index
      %c0_22 = arith.constant 0 : index
      %60 = vector.load %arg5[%c0_21, %c0_22] : memref<8x128xf32, #tpu.memory_space<vmem>>, vector<8x128xf32>
      tpu.vector_store %arg5[%c0_21, %c0_22], %59 {strides = array<i32>} : memref<8x128xf32, #tpu.memory_space<vmem>>, vector<8x128xf32>,
    } else {
    }
    %c0 = arith.constant 0 : index
    %c0_1 = arith.constant 0 : index
    %3 = vector.load %arg2[%c0, %c0_1] : memref<8x128xf32, #tpu.memory_space<vmem>>, vector<8x128xf32>
    %c0_2 = arith.constant 0 : index
    %c0_3 = arith.constant 0 : index
    %4 = vector.load %arg3[%c0_2, %c0_3] : memref<8x128xf32, #tpu.memory_space<vmem>>, vector<8x128xf32>
    %cst = arith.constant 1.000000e+00 : f32
    %5 = vector.broadcast %cst : f32 to vector<8x128xf32>
    %6 = arith.cmpf oeq, %4, %5 : vector<8x128xf32>
    %7 = arith.extui %6 : vector<8x128xi1> to vector<8x128xi32>
    %8 = arith.sitofp %7 : vector<8x128xi32> to vector<8x128xf32>
    %cst_4 = arith.constant 1.000000e+00 : f32
    %9 = vector.broadcast %cst_4 : f32 to vector<8x128xf32>
    %10 = arith.subf %9, %8 : vector<8x128xf32>
    %cst_5 = arith.constant 0.000000e+00 : f32
    %11 = vector.broadcast %cst_5 : f32 to vector<8x128xf32>
    %12 = arith.cmpf one, %4, %11 : vector<8x128xf32>
    %cst_6 = arith.constant 4.000000e-01 : f32
    %cst_7 = arith.constant 6.000000e-01 : f32
    %13 = vector.broadcast %cst_6 : f32 to vector<8x128xf32>
    %14 = vector.broadcast %cst_7 : f32 to vector<8x128xf32>
    %15 = arith.select %12, %13, %14 : vector<8x128xi1>, vector<8x128xf32>
    %cst_8 = arith.constant 1.000000e+00 : f32
    %16 = vector.broadcast %cst_8 : f32 to vector<8x128xf32>
    %17 = arith.subf %16, %3 : vector<8x128xf32>
    %18 = arith.select %6, %3, %17 : vector<8x128xi1>, vector<8x128xf32>
    %cst_9 = arith.constant 9.99999974E-6 : f32
    %19 = vector.broadcast %cst_9 : f32 to vector<8x128xf32>
    %20 = arith.addf %18, %19 : vector<8x128xf32>
    %21 = math.log %20 : vector<8x128xf32>
    %cst_10 = arith.constant 1.000000e+00 : f32
    %22 = vector.broadcast %cst_10 : f32 to vector<8x128xf32>
    %23 = arith.subf %22, %3 : vector<8x128xf32>
    %24 = arith.mulf %23, %23 : vector<8x128xf32>
    %25 = arith.mulf %8, %24 : vector<8x128xf32>
    %26 = arith.mulf %25, %21 : vector<8x128xf32>
    %cst_11 = arith.constant 1.000000e+00 : f32
    %27 = vector.broadcast %cst_11 : f32 to vector<8x128xf32>
    %28 = arith.subf %27, %4 : vector<8x128xf32>
    %29 = arith.mulf %28, %28 : vector<8x128xf32>
    %30 = arith.mulf %29, %29 : vector<8x128xf32>
    %31 = arith.mulf %10, %30 : vector<8x128xf32>
    %32 = arith.mulf %3, %3 : vector<8x128xf32>
    %33 = arith.mulf %31, %32 : vector<8x128xf32>
    %34 = arith.mulf %33, %21 : vector<8x128xf32>
    %35 = arith.addf %26, %34 : vector<8x128xf32>
    %36 = arith.mulf %15, %35 : vector<8x128xf32>
    %c1_i32 = arith.constant 1 : i32
    %37 = arith.muli %arg0, %c1_i32 : i32
    %38 = arith.addi %37, %arg1 : i32
    %39 = tpu.iota {dimensions = array<i32: 0>} : vector<8x128xi32>
    %40 = tpu.iota {dimensions = array<i32: 1>} : vector<8x128xi32>
    %c8_i32 = arith.constant 8 : i32
    %41 = arith.muli %38, %c8_i32 : i32
    %42 = vector.broadcast %41 : i32 to vector<8x128xi32>
    %43 = arith.addi %42, %39 : vector<8x128xi32>
    %c128_i32 = arith.constant 128 : i32
    %44 = vector.broadcast %c128_i32 : i32 to vector<8x128xi32>
    %45 = arith.muli %43, %44 : vector<8x128xi32>
    %46 = arith.addi %45, %40 : vector<8x128xi32>
    %c512_i32 = arith.constant 512 : i32
    %47 = vector.broadcast %c512_i32 : i32 to vector<8x128xi32>
    %48 = arith.cmpi slt, %46, %47 : vector<8x128xi32>
    %cst_12 = arith.constant 0.000000e+00 : f32
    %49 = vector.broadcast %cst_12 : f32 to vector<8x128xf32>
    %50 = arith.select %48, %36, %49 : vector<8x128xi1>, vector<8x128xf32>
    %c0_13 = arith.constant 0 : index
    %c0_14 = arith.constant 0 : index
    %51 = vector.load %arg5[%c0_13, %c0_14] : memref<8x128xf32, #tpu.memory_space<vmem>>, vector<8x128xf32>
    %52 = vector.shape_cast %50 : vector<8x128xf32> to vector<1x8x128xf32>
    %cst_15 = arith.constant dense<0.000000e+00> : vector<8x128xf32>
    %53 = vector.multi_reduction <add>, %52, %cst_15 [0] : vector<1x8x128xf32> to vector<8x128xf32>
    %54 = arith.addf %51, %53 : vector<8x128xf32>
    %c0_16 = arith.constant 0 : index
    %c0_17 = arith.constant 0 : index
    %55 = vector.load %arg5[%c0_16, %c0_17] : memref<8x128xf32, #tpu.memory_space<vmem>>, vector<8x128xf32>
    tpu.vector_store %arg5[%c0_16, %c0_17], %54 {strides = array<i32>} : memref<8x128xf32, #tpu.memory_space<vmem>>, vector<8x128xf32>,
    %c0_i32_18 = arith.constant 0 : i32
    %56 = arith.cmpi eq, %arg1, %c0_i32_18 : i32
    %57 = arith.extui %56 : i1 to i32
    %c0_i32_19 = arith.constant 0 : i32
    %58 = arith.cmpi ne, %57, %c0_i32_19 : i32
    scf.if %58 {
      %c0_20 = arith.constant 0 : index
      %c0_21 = arith.constant 0 : index
      %59 = vector.load %arg5[%c0_20, %c0_21] : memref<8x128xf32, #tpu.memory_space<vmem>>, vector<8x128xf32>
      %60 = vector.shape_cast %59 : vector<8x128xf32> to vector<1x8x128xf32>
      %cst_22 = arith.constant dense<0.000000e+00> : vector<1xf32>
      %61 = vector.multi_reduction <add>, %60, %cst_22 [1, 2] : vector<1x8x128xf32> to vector<1xf32>
      %62 = vector.shape_cast %61 : vector<1xf32> to vector<1x1x1xf32>
      %63 = vector.extract %62[0, 0, 0] : f32 from vector<1x1x1xf32>
      %cst_23 = arith.constant -0.001953125 : f32
      %64 = arith.mulf %63, %cst_23 : f32
      %65 = vector.broadcast %64 : f32 to vector<1x1xf32>
      %c0_24 = arith.constant 0 : index
      %c0_25 = arith.constant 0 : index
      %66 = vector.load %arg4[%c0_24, %c0_25] : memref<1x1xf32, #tpu.memory_space<vmem>>, vector<1x1xf32>
      tpu.vector_store %arg4[%c0_24, %c0_25], %65 {strides = array<i32>} : memref<1x1xf32, #tpu.memory_space<vmem>>, vector<1x1xf32>,
    } else {
    }
    return
  }
  func.func @transform_0(%arg0: i32, %arg1: i32) -> (i32, i32) {
    %c1_i32 = arith.constant 1 : i32
    %0 = arith.muli %arg0, %c1_i32 : i32
    %1 = arith.addi %0, %arg1 : i32
    %c0_i32 = arith.constant 0 : i32
    %c0_i32_0 = arith.constant 0 : i32
    return %1, %c0_i32 : i32, i32
  }
  func.func @transform_1(%arg0: i32, %arg1: i32) -> (i32, i32) {
    %c1_i32 = arith.constant 1 : i32
    %0 = arith.muli %arg0, %c1_i32 : i32
    %1 = arith.addi %0, %arg1 : i32
    %c0_i32 = arith.constant 0 : i32
    %c0_i32_0 = arith.constant 0 : i32
    return %1, %c0_i32 : i32, i32
  }
  func.func @transform_2(%arg0: i32, %arg1: i32) -> (i32, i32) {
    %c0_i32 = arith.constant 0 : i32
    %c0_i32_0 = arith.constant 0 : i32
    return %arg0, %c0_i32 : i32, i32
  }
}

</mosaic_0001>

<llo_original>
// kernel: tpu_custom_call.1
$region0: #{tpu_custom_call.1}
  #allocation0 [shape = 'u32[]', space=smem, size = 0x4, offset = 0x4, fixed_abs, tag = 'smem constant byte address 0x4 - core index']
  #allocation1 [shape = 'u32[144,128]{1,0:T(1,128)}', space=vmem, size = 0x12000, scoped, tag = 'internal scratch']
  #allocation2 [shape = 'f32[8,128]{1,0:T(8,128)}', space=vmem, size = 0x1000, scoped, tag = 'scratch operand']
  %s0 = inlined_call_operand.hbm [shape: f32[4,128], index: 0, kind: input, shape index: {}]
  %s1 = inlined_call_operand.hbm [shape: f32[4,128], index: 1, kind: input, shape index: {}]
  %s2 = inlined_call_operand.hbm [shape: f32[1,1], index: 2, kind: output, shape index: {}]
  %s3 = sld [smem:[#allocation0]]
  $region34: #{tpu_custom_call.1} parent=0
    _
  %s5 = ssub.s32 1, %s3
  %s6 = scalar_select 0, %s5, %s3
  $region1: #{tpu_custom_call.1} parent=0
    #allocation3 [shape = 'u8[4096]{0}', space=vmem, size = 0x1000, scoped, tag = 'input window, operand 0, single buffered']
    #allocation4 [shape = 's32[1]{0}', space=sflag, size = 0x4, scoped, tag = 'scoped memory for tpu_custom_call.1']
    #allocation5 [shape = 's32[1]{0}', space=sflag, size = 0x4, scoped, tag = 'scoped memory for tpu_custom_call.1']
    #allocation6 [shape = 'u8[4096]{0}', space=vmem, size = 0x1000, scoped, tag = 'input window, operand 1, single buffered']
    #allocation7 [shape = 's32[1]{0}', space=sflag, size = 0x4, scoped, tag = 'scoped memory for tpu_custom_call.1']
    #allocation8 [shape = 'u8[512]{0}', space=vmem, size = 0x400, scoped, tag = 'output window, operand 0, single buffered']
    %7 = vsyncpa [#allocation4], 0
    %8 = vsyncpa [#allocation7], 0
    %9 = vsyncpa [#allocation5], 0
    // Predicated region
    $region2: #{tpu_custom_call.1} parent=1 // pred_check
      _
    $region3: #{tpu_custom_call.1} parent=1 // pred_check_branch
      %11 = sbr.rel (0) target = $region5
    $region4: #{tpu_custom_call.1} parent=1 // pred_region
      %s12 = sadd.s32 0, 0
      %s13 = smul.u32 2, %s12
      %s14 = ssub.s32 1, %s13
      %s15 = smul.u32 64, %s14
      %s17 = ssub.s32 128, %s15
      %18 = vsyncadd [#allocation4], %s17
      %p19 = scmp.ne.s32.totalorder 0, %s15
      %s20 = smul.addr %s13, 64
      %s21 = scalar_lea.hbm %s0, %s20
      %s22 = smul.u32 4, %s14
      %s23 = sshll.u32 [#allocation3], 4
      %s24 = int_to_ptr.vmem [resolvable:$true] %s23
      %s25 = sshll.u32 %s22, 4
      %29 = dma.hbm_to_vmem [thread:$0]  (%p19), %s21, %s25, %s24, [#allocation4], 64, 64, 4
    $region5: #{tpu_custom_call.1} parent=1 // pred_fallthru
      _
    // Predicated region
    $region6: #{tpu_custom_call.1} parent=1 // pred_check
      _
    $region7: #{tpu_custom_call.1} parent=1 // pred_check_branch
      %31 = sbr.rel (0) target = $region9
    $region8: #{tpu_custom_call.1} parent=1 // pred_region
      %s32 = sadd.s32 0, 0
      %s33 = smul.u32 2, %s32
      %s34 = ssub.s32 1, %s33
      %s35 = smul.u32 64, %s34
      %s37 = ssub.s32 128, %s35
      %38 = vsyncadd [#allocation7], %s37
      %p39 = scmp.ne.s32.totalorder 0, %s35
      %s40 = smul.addr %s33, 64
      %s41 = scalar_lea.hbm %s1, %s40
      %s42 = smul.u32 4, %s34
      %s43 = sshll.u32 [#allocation6], 4
      %s44 = int_to_ptr.vmem [resolvable:$true] %s43
      %s45 = sshll.u32 %s42, 4
      %49 = dma.hbm_to_vmem [thread:$0]  (%p39), %s41, %s45, %s44, [#allocation7], 64, 64, 4
    $region9: #{tpu_custom_call.1} parent=1 // pred_fallthru
      _
    // Predicated region
    $region10: #{tpu_custom_call.1} parent=1 // pred_check
      _
    $region11: #{tpu_custom_call.1} parent=1 // pred_check_branch
      %51 = sbr.rel (0) target = $region13
    $region12: #{tpu_custom_call.1} parent=1 // pred_region
      %52 = dma.done [#allocation4], 128
    $region13: #{tpu_custom_call.1} parent=1 // pred_fallthru
      _
    // Predicated region
    $region14: #{tpu_custom_call.1} parent=1 // pred_check
      _
    $region15: #{tpu_custom_call.1} parent=1 // pred_check_branch
      %54 = sbr.rel (0) target = $region17
    $region16: #{tpu_custom_call.1} parent=1 // pred_region
      %55 = dma.done [#allocation7], 128
    $region17: #{tpu_custom_call.1} parent=1 // pred_fallthru
      _
    %s56 = sadd.s32 0, 0
    %s57 = smul.u32 2, %s56
    %s58 = ssub.s32 1, %s57
    %s59 = smul.u32 64, %s58
    %s60 = sadd.s32 0, 0
    %s61 = smul.u32 2, %s60
    %s62 = ssub.s32 1, %s61
    %s63 = smul.u32 64, %s62
    %p64 = scmp.eq.s32.totalorder 0, 0
    // Predicated region
    $region18: #{tpu_custom_call.1} parent=1 // pred_check
      %p65 = pneg %p64
    $region19: #{tpu_custom_call.1} parent=1 // pred_check_branch
      %67 = sbr.rel (%p65) target = $region21
    $region20: #{tpu_custom_call.1} parent=1 // pred_region
      %68 = vst [vmem:[#allocation2] sm:$0xff] 0.0
    $region21: #{tpu_custom_call.1} parent=1 // pred_fallthru
      _
    %v69 = vld [vmem:[#allocation3] sm:$0xff]
    %v70 = vld [vmem:[#allocation6] sm:$0xff]
    %vm71 = vcmp.eq.f32.partialorder %v70, 1.0
    %v72 = vsel %vm71, 1, 0
    %v73 = vcvt.s32.f32 %v72
    %v74 = vsub.f32 1.0, %v73
    %vm75 = vcmp.ne.f32.partialorder %v70, 0.0
    %v76 = vsel %vm75, 0.4, 0.6
    %v77 = vsub.f32 1.0, %v69
    %v78 = vsel %vm71, %v69, %v77
    %v79 = vadd.f32 %v78, 1e-05
    %v80 = vlog2.pop %v79
    %v81 = vmul.f32 %v80, 0.6931472
    %v82 = vmul.f32 %v77, %v77
    %v83 = vmul.f32 %v73, %v82
    %v84 = vmul.f32 %v83, %v81
    %v85 = vsub.f32 1.0, %v70
    %v86 = vmul.f32 %v85, %v85
    %v87 = vmul.f32 %v86, %v86
    %v88 = vmul.f32 %v74, %v87
    %v89 = vmul.f32 %v69, %v69
    %v90 = vmul.f32 %v88, %v89
    %v91 = vmul.f32 %v90, %v81
    %v92 = vadd.f32 %v84, %v91
    %v93 = vmul.f32 %v76, %v92
    %s94 = sadd.s32 0, 0
    %v95 = vlaneseq
    %v96 = vshrl.u32 %v95, 7
    %v97 = vlaneseq
    %v98 = vand.u32 %v97, 127
    %s99 = smul.u32 %s94, 8
    %v100 = vstv %s99
    %v101 = vadd.s32 %v100, %v96
    %v102 = vmul.u32 %v101, 128
    %v103 = vadd.s32 %v102, %v98
    %vm104 = vcmp.lt.s32.totalorder %v103, 512
    %v105 = vsel %vm104, %v93, 0.0
    %v106 = vld [vmem:[#allocation2] sm:$0xff]
    %v107 = vadd.f32 %v105, 0.0
    %v108 = vadd.f32 %v106, %v107
    %109 = vst [vmem:[#allocation2] sm:$0xff] %v108
    // Predicated region
    $region22: #{tpu_custom_call.1} parent=1 // pred_check
      %p110 = pneg %p64
    $region23: #{tpu_custom_call.1} parent=1 // pred_check_branch
      %112 = sbr.rel (%p110) target = $region25
    $region24: #{tpu_custom_call.1} parent=1 // pred_region
      %v113 = vld [vmem:[#allocation2] sm:$0xff]
      %114 = vadd.xlane.f32.xlu0 %v113
      %v115 = vpop.xlane.xlu0 %114
      %v116 = vrot.slane %v115, 4
      %v117 = vadd.f32 %v115, %v116
      %v118 = vrot.slane %v117, 2
      %v119 = vadd.f32 %v117, %v118
      %v120 = vrot.slane %v119, 1
      %v121 = vadd.f32 %v119, %v120
      %s122 = vtos %v121
      %s123 = smul.f32 %s122, -0.001953125
      %v124 = vstv %s123
      %vm125 = vcmask 0
      %126 = vst.msk [vmem:[#allocation8] sm:$0x1] %vm125, %v124
    $region25: #{tpu_custom_call.1} parent=1 // pred_fallthru
      _
    // Predicated region
    $region26: #{tpu_custom_call.1} parent=1 // pred_check
      _
    $region27: #{tpu_custom_call.1} parent=1 // pred_check_branch
      %128 = sbr.rel (0) target = $region29
    $region28: #{tpu_custom_call.1} parent=1 // pred_region
      %s130 = ssub.s32 16, 16
      %131 = vsyncadd [#allocation5], %s130
      %s133 = sshll.u32 [#allocation8], 4
      %s134 = int_to_ptr.vmem [resolvable:$true] %s133
      %136 = dma.vmem_to_hbm [thread:$0]  %s134, 16, %s2, [#allocation5]
    $region29: #{tpu_custom_call.1} parent=1 // pred_fallthru
      _
    // Predicated region
    $region30: #{tpu_custom_call.1} parent=1 // pred_check
      _
    $region31: #{tpu_custom_call.1} parent=1 // pred_check_branch
      %138 = sbr.rel (0) target = $region33
    $region32: #{tpu_custom_call.1} parent=1 // pred_region
      %139 = dma.done [#allocation5], 16
    $region33: #{tpu_custom_call.1} parent=1 // pred_fallthru
      _
    %140 = vsyncpa [#allocation4], 1
    %141 = vsyncpa [#allocation7], 1
    %142 = vsyncpa [#allocation5], 1

</llo_original>
